<compile_context>
chip_gen: v7x
topology: tpu7x:2x2x1
jax: 0.10.0
libtpu: 0.0.40
codegen_flags: <defaults>
</compile_context>

<pallas_src>
import math

import jax
import jax.numpy as jnp
from jax import lax
from jax.experimental import pallas as pl
from jax.experimental.pallas import tpu as pltpu


def _round_up(x, m):
    return ((x + m - 1) // m) * m


def _cdiv(a, b):
    return (a + b - 1) // b


# ---------------------------------------------------------------------------
# Fused im2col + matmul conv kernel
# ---------------------------------------------------------------------------
def _make_fused_conv_kernel(k, Wp, tl):
    """Builds the kernel body for one (batch, L-tile) grid step.

    Refs:
      xa_ref: (1, Cp, tl)      flattened padded image, columns [l0, l0+tl)
      xb_ref: (1, Cp, halo)    halo columns              [l0+tl, l0+tl+halo)
      w_ref : (k*k, OC, Cp)    weight; row kh*k+kw == ker[:, :, kh, kw]
      o_ref : (1, OC, tl)      output tile (channel-major, flat spatial on lanes)
    """

    def kernel(xa_ref, xb_ref, w_ref, o_ref):
        # Stitch tile + halo into one resident window; everything after this is
        # a static slice (no dynamic lane indexing).
        win = jnp.concatenate([xa_ref[0], xb_ref[0]], axis=-1)  # (Cp, tl+halo)
        oc = o_ref.shape[1]
        acc = jnp.zeros((oc, tl), jnp.float32)
        # Fused im2col: patch row (c, kh, kw) == image shifted by kh*Wp + kw.
        # k*k small MXU matmuls over shifted views of the VMEM-resident window.
        for kh in range(k):
            for kw in range(k):
                off = kh * Wp + kw
                acc = acc + jnp.dot(
                    w_ref[kh * k + kw],            # (OC, Cp)
                    win[:, off:off + tl],          # (Cp, tl), static slice
                    preferred_element_type=jnp.float32)
        o_ref[0] = acc.astype(o_ref.dtype)

    return kernel


def fused_conv2d(img, w_kk, k, pad, *, tl_desired=1024,
                 compute_dtype=jnp.bfloat16, out_dtype=jnp.float32):
    """Stride-1 2D conv, NCHW in / NCHW out, im2col fused into the kernel.

    img:   (B, C, H, W) float32
    w_kk:  (k*k, OC, Cp) in compute_dtype, row kh*k+kw = ker[:, :, kh, kw],
           channels zero-padded to Cp = round_up(C, 8).
    """
    B, C, H, W = img.shape
    kk, OC, Cp = w_kk.shape
    assert kk == k * k and Cp >= C and Cp % 8 == 0

    Hp, Wp = H + 2 * pad, W + 2 * pad
    OH, OW = Hp - k + 1, Wp - k + 1
    assert OH > 0 and OW > 0

    # Output enumerated on the padded-width grid (columns ow >= OW are garbage
    # and sliced off afterwards -- only a Wp/OW write overhead, instead of the
    # old 16x OC-padding + trailing transpose).
    L_out = OH * Wp
    shift_max = (k - 1) * Wp + (k - 1)           # largest in-window shift
    halo = _round_up(max(shift_max, 1), 128)     # lane-aligned halo width
    # Tile along L: multiple of `halo` (so the halo BlockSpec index works) and
    # >= shift_max; clamp to the problem so small images use a single step.
    tl = max(halo, _round_up(min(tl_desired, L_out), halo))
    n_lt = _cdiv(L_out, tl)
    L_out_pad = n_lt * tl
    L_img_pad = L_out_pad + tl                   # +1 tile so halo block i+1 is valid

    # Cheap XLA prep on the *image-sized* data only: cast once to compute dtype,
    # zero-pad channels to Cp and spatial borders, flatten spatial, pad tail.
    x = img.astype(compute_dtype)
    x = jnp.pad(x, ((0, 0), (0, Cp - C), (pad, pad), (pad, pad)))
    x = x.reshape(B, Cp, Hp * Wp)
    x = jnp.pad(x, ((0, 0), (0, 0), (0, L_img_pad - Hp * Wp)))

    hs = tl // halo                              # tile index -> halo block index
    isz = jnp.dtype(compute_dtype).itemsize
    osz = jnp.dtype(out_dtype).itemsize
    kernel = _make_fused_conv_kernel(k, Wp, tl)

    out_flat = pl.pallas_call(
        kernel,
        out_shape=jax.ShapeDtypeStruct((B, OC, L_out_pad), out_dtype),
        grid_spec=pltpu.PrefetchScalarGridSpec(
            num_scalar_prefetch=0,
            grid=(B, n_lt),
            in_specs=[
                # Current tile of the flattened image.
                pl.BlockSpec((1, Cp, tl), lambda b, i: (b, 0, i)),
                # Halo block right after the tile (same array passed again).
                pl.BlockSpec((1, Cp, halo), lambda b, i: (b, 0, (i + 1) * hs)),
                # Whole (tiny) weight, resident.
                pl.BlockSpec((kk, OC, Cp), lambda b, i: (0, 0, 0)),
            ],
            out_specs=pl.BlockSpec((1, OC, tl), lambda b, i: (b, 0, i)),
        ),
        compiler_params=pltpu.CompilerParams(
            # Both axes independent -> no reduction axis, megacore-shardable.
            dimension_semantics=("parallel", "parallel"),
        ),
        cost_estimate=pl.CostEstimate(
            flops=2 * B * n_lt * OC * tl * Cp * kk,
            transcendentals=0,
            # Actual DMA traffic: per step one image tile + one halo block +
            # the weight, plus the (slightly padded) output written once.
            bytes_accessed=(B * n_lt * (Cp * (tl + halo) + kk * OC * Cp) * isz
                            + B * OC * L_out_pad * osz),
        ),
    )(x, x, w_kk)

    # Drop garbage columns (ow >= OW) and tail padding; result is already NCHW.
    out = out_flat[:, :, :L_out].reshape(B, OC, OH, Wp)[:, :, :, :OW]
    return out


# ---------------------------------------------------------------------------
# Module equivalent
# ---------------------------------------------------------------------------
class Convolution:
    """JAX/Pallas port of the PyTorch `Convolution` module (bias-free conv via
    unfold + matmul).  Faithful to the PyTorch __init__: the kernel is forced
    square via kernel_size[1] and pad is taken from padding[1].  The torch
    forward always unfolds with stride=1, so that is the only self-consistent
    configuration and we assert it.

    `compute_dtype` (default bfloat16, f32 accumulation) is an explicit speed
    knob; pass jnp.float32 for bit-faithful-to-f32 accuracy."""

    def __init__(self, in_channels, out_channels, kernel_size, stride=1,
                 padding=(0, 0), key=None, compute_dtype=jnp.bfloat16):
        self.in_channels = in_channels
        self.out_channels = out_channels
        self.kernel_size = kernel_size[1]
        self.stride = stride
        self.pad = padding[1]
        self.compute_dtype = compute_dtype
        assert self.stride == 1, (
            "torch forward unfolds with stride=1; stride != 1 is inconsistent")

        # Deterministic kaiming_uniform_(a=sqrt(5)) equivalent:
        # bound = sqrt(6 / ((1 + a^2) * fan_in)) = 1 / sqrt(fan_in)
        if key is None:
            key = jax.random.PRNGKey(0)
        k = self.kernel_size
        fan_in = in_channels * k * k
        bound = 1.0 / math.sqrt(fan_in)
        self.ker = jax.random.uniform(
            key, (out_channels, in_channels, k, k),
            dtype=jnp.float32, minval=-bound, maxval=bound)

        # Weight prepared ONCE: cast to compute dtype, zero-pad channels to a
        # multiple of 8, rearrange to (k*k, OC, Cp) with row kh*k+kw =
        # ker[:, :, kh, kw]  (matches the kernel's shifted-window ordering).
        Cp = _round_up(in_channels, 8)
        w = self.ker.astype(compute_dtype)
        w = jnp.pad(w, ((0, 0), (0, Cp - in_channels), (0, 0), (0, 0)))
        self._w = jnp.transpose(w, (2, 3, 0, 1)).reshape(k * k, out_channels, Cp)

    def __call__(self, img, tl_desired=1024):
        # img: (B, C, H, W) float32 -- NCHW, same as PyTorch
        B, C, H, W = img.shape
        assert C == self.in_channels
        k = self.kernel_size
        out_h = int((H - k + 2 * self.pad) / self.stride) + 1
        out_w = int((W - k + 2 * self.pad) / self.stride) + 1

        out = fused_conv2d(img, self._w, k, self.pad,
                           tl_desired=tl_desired,
                           compute_dtype=self.compute_dtype)
        # torch's fold(kernel_size=1) is just this reshape.
        return out.reshape(B, self.out_channels, out_h, out_w)


# ---------------------------------------------------------------------------
# Reference (pure JAX) for sanity checks
# ---------------------------------------------------------------------------
def _reference_conv(img, ker, pad):
    return lax.conv_general_dilated(
        img, ker, window_strides=(1, 1),
        padding=[(pad, pad), (pad, pad)],
        dimension_numbers=("NCHW", "OIHW", "NCHW"),
        precision=lax.Precision.HIGHEST)


if __name__ == "__main__":
    key = jax.random.PRNGKey(0)
    k_img, k_w, k_img2, k_w2 = jax.random.split(key, 4)

    # --- config 1: nominal small shape, default bf16 compute ----------------
    B, C, H, W = 2, 4, 16, 16
    OC, KS = 8, (3, 3)
    img = jax.random.normal(k_img, (B, C, H, W), dtype=jnp.float32)
    conv = Convolution(C, OC, KS, stride=1, padding=(0, 0), key=k_w)
    out = jax.block_until_ready(conv(img))
    assert out.shape == (B, OC, H - 2, W - 2), out.shape

    # Tight check of the kernel math: reference from the same bf16-quantized
    # operands (f32 accumulation), so only summation-order noise remains.
    ref_bf16 = _reference_conv(
        img.astype(jnp.bfloat16).astype(jnp.float32),
        conv.ker.astype(jnp.bfloat16).astype(jnp.float32), conv.pad)
    err_b = float(jnp.max(jnp.abs(out - ref_bf16)))
    assert jnp.allclose(out, ref_bf16, atol=2e-3, rtol=2e-3), err_b

    # Module-semantics check vs. the full-f32 conv; loose tolerance covers the
    # documented bf16 operand quantization.
    ref_f32 = _reference_conv(img, conv.ker, conv.pad)
    err_f = float(jnp.max(jnp.abs(out - ref_f32)))
    assert jnp.allclose(out, ref_f32, atol=5e-2, rtol=5e-2), err_f

    # --- config 2: nonzero padding + channels not a multiple of 8 -----------
    B2, C2, H2, W2, OC2 = 2, 3, 20, 20, 16
    img2 = jax.random.normal(k_img2, (B2, C2, H2, W2), dtype=jnp.float32)
    conv2 = Convolution(C2, OC2, (3, 3), stride=1, padding=(1, 1), key=k_w2)
    out2 = jax.block_until_ready(conv2(img2))
    assert out2.shape == (B2, OC2, H2, W2), out2.shape
    ref2 = _reference_conv(
        img2.astype(jnp.bfloat16).astype(jnp.float32),
        conv2.ker.astype(jnp.bfloat16).astype(jnp.float32), conv2.pad)
    err2 = float(jnp.max(jnp.abs(out2 - ref2)))
    assert jnp.allclose(out2, ref2, atol=2e-3, rtol=2e-3), err2

    # --- config 3: force multiple L tiles to exercise the halo path ---------
    out3 = jax.block_until_ready(conv(img, tl_desired=128))
    err3 = float(jnp.max(jnp.abs(out3 - out)))
    assert jnp.allclose(out3, out, atol=1e-5, rtol=1e-5), err3

    print("KERNEL_OK")
</pallas_src>

<mosaic_0001>
module attributes {stable_mosaic.version = 11 : i64} {
  func.func @kernel(%arg0: i32, %arg1: i32, %arg2: memref<1x8x256xbf16, #tpu.memory_space<vmem>>, %arg3: memref<1x8x128xbf16, #tpu.memory_space<vmem>>, %arg4: memref<9x8x8xbf16, #tpu.memory_space<vmem>>, %arg5: memref<1x8x256xf32, #tpu.memory_space<vmem>>) attributes {dimension_semantics = [#tpu.dimension_semantics<parallel>, #tpu.dimension_semantics<parallel>], iteration_bounds = array<i64: 2, 1>, scalar_prefetch = 0 : i64, scratch_operands = 0 : i64, tpu.core_type = #tpu.core_type<tc>, window_params = [{transform_indices = @transform_0, window_bounds = array<i64: 1, 8, 256>}, {transform_indices = @transform_1, window_bounds = array<i64: 1, 8, 128>}, {pipeline_mode = #tpu.pipeline_mode<synchronous>, transform_indices = @transform_2, window_bounds = array<i64: 9, 8, 8>}, {transform_indices = @transform_3, window_bounds = array<i64: 1, 8, 256>}]} {
    %c0 = arith.constant 0 : index
    %c0_0 = arith.constant 0 : index
    %c0_1 = arith.constant 0 : index
    %0 = vector.load %arg2[%c0, %c0_0, %c0_1] : memref<1x8x256xbf16, #tpu.memory_space<vmem>>, vector<1x8x256xbf16>
    %1 = vector.shape_cast %0 : vector<1x8x256xbf16> to vector<8x256xbf16>
    %c0_2 = arith.constant 0 : index
    %c0_3 = arith.constant 0 : index
    %c0_4 = arith.constant 0 : index
    %2 = vector.load %arg3[%c0_2, %c0_3, %c0_4] : memref<1x8x128xbf16, #tpu.memory_space<vmem>>, vector<1x8x128xbf16>
    %3 = vector.shape_cast %2 : vector<1x8x128xbf16> to vector<8x128xbf16>
    %4 = tpu.concatenate %1, %3 in 1 : vector<8x256xbf16>, vector<8x128xbf16> -> vector<8x384xbf16>
    %cst = arith.constant 0.000000e+00 : f32
    %5 = vector.broadcast %cst : f32 to vector<8x256xf32>
    %c0_5 = arith.constant 0 : index
    %c0_6 = arith.constant 0 : index
    %c0_7 = arith.constant 0 : index
    %6 = vector.load %arg4[%c0_5, %c0_6, %c0_7] : memref<9x8x8xbf16, #tpu.memory_space<vmem>>, vector<1x8x8xbf16>
    %7 = vector.shape_cast %6 : vector<1x8x8xbf16> to vector<8x8xbf16>
    %8 = vector.extract_strided_slice %4 {offsets = [0, 0], sizes = [8, 256], strides = [1, 1]} : vector<8x384xbf16> to vector<8x256xbf16>
    %cst_8 = arith.constant dense<0.000000e+00> : vector<8x256xf32>
    %9 = tpu.matmul %7, %8, %cst_8 {dimension_numbers = #tpu.dot_dimension_numbers<[1], [0], [0], [1], [0, 0, 1, 1], [], []>} : vector<8x8xbf16>, vector<8x256xbf16>, vector<8x256xf32> -> vector<8x256xf32>
    %10 = arith.addf %5, %9 : vector<8x256xf32>
    %c1 = arith.constant 1 : index
    %c0_9 = arith.constant 0 : index
    %c0_10 = arith.constant 0 : index
    %11 = vector.load %arg4[%c1, %c0_9, %c0_10] : memref<9x8x8xbf16, #tpu.memory_space<vmem>>, vector<1x8x8xbf16>
    %12 = vector.shape_cast %11 : vector<1x8x8xbf16> to vector<8x8xbf16>
    %13 = vector.extract_strided_slice %4 {offsets = [0, 1], sizes = [8, 256], strides = [1, 1]} : vector<8x384xbf16> to vector<8x256xbf16>
    %cst_11 = arith.constant dense<0.000000e+00> : vector<8x256xf32>
    %14 = tpu.matmul %12, %13, %cst_11 {dimension_numbers = #tpu.dot_dimension_numbers<[1], [0], [0], [1], [0, 0, 1, 1], [], []>} : vector<8x8xbf16>, vector<8x256xbf16>, vector<8x256xf32> -> vector<8x256xf32>
    %15 = arith.addf %10, %14 : vector<8x256xf32>
    %c2 = arith.constant 2 : index
    %c0_12 = arith.constant 0 : index
    %c0_13 = arith.constant 0 : index
    %16 = vector.load %arg4[%c2, %c0_12, %c0_13] : memref<9x8x8xbf16, #tpu.memory_space<vmem>>, vector<1x8x8xbf16>
    %17 = vector.shape_cast %16 : vector<1x8x8xbf16> to vector<8x8xbf16>
    %18 = vector.extract_strided_slice %4 {offsets = [0, 2], sizes = [8, 256], strides = [1, 1]} : vector<8x384xbf16> to vector<8x256xbf16>
    %cst_14 = arith.constant dense<0.000000e+00> : vector<8x256xf32>
    %19 = tpu.matmul %17, %18, %cst_14 {dimension_numbers = #tpu.dot_dimension_numbers<[1], [0], [0], [1], [0, 0, 1, 1], [], []>} : vector<8x8xbf16>, vector<8x256xbf16>, vector<8x256xf32> -> vector<8x256xf32>
    %20 = arith.addf %15, %19 : vector<8x256xf32>
    %c3 = arith.constant 3 : index
    %c0_15 = arith.constant 0 : index
    %c0_16 = arith.constant 0 : index
    %21 = vector.load %arg4[%c3, %c0_15, %c0_16] : memref<9x8x8xbf16, #tpu.memory_space<vmem>>, vector<1x8x8xbf16>
    %22 = vector.shape_cast %21 : vector<1x8x8xbf16> to vector<8x8xbf16>
    %23 = vector.extract_strided_slice %4 {offsets = [0, 16], sizes = [8, 256], strides = [1, 1]} : vector<8x384xbf16> to vector<8x256xbf16>
    %cst_17 = arith.constant dense<0.000000e+00> : vector<8x256xf32>
    %24 = tpu.matmul %22, %23, %cst_17 {dimension_numbers = #tpu.dot_dimension_numbers<[1], [0], [0], [1], [0, 0, 1, 1], [], []>} : vector<8x8xbf16>, vector<8x256xbf16>, vector<8x256xf32> -> vector<8x256xf32>
    %25 = arith.addf %20, %24 : vector<8x256xf32>
    %c4 = arith.constant 4 : index
    %c0_18 = arith.constant 0 : index
    %c0_19 = arith.constant 0 : index
    %26 = vector.load %arg4[%c4, %c0_18, %c0_19] : memref<9x8x8xbf16, #tpu.memory_space<vmem>>, vector<1x8x8xbf16>
    %27 = vector.shape_cast %26 : vector<1x8x8xbf16> to vector<8x8xbf16>
    %28 = vector.extract_strided_slice %4 {offsets = [0, 17], sizes = [8, 256], strides = [1, 1]} : vector<8x384xbf16> to vector<8x256xbf16>
    %cst_20 = arith.constant dense<0.000000e+00> : vector<8x256xf32>
    %29 = tpu.matmul %27, %28, %cst_20 {dimension_numbers = #tpu.dot_dimension_numbers<[1], [0], [0], [1], [0, 0, 1, 1], [], []>} : vector<8x8xbf16>, vector<8x256xbf16>, vector<8x256xf32> -> vector<8x256xf32>
    %30 = arith.addf %25, %29 : vector<8x256xf32>
    %c5 = arith.constant 5 : index
    %c0_21 = arith.constant 0 : index
    %c0_22 = arith.constant 0 : index
    %31 = vector.load %arg4[%c5, %c0_21, %c0_22] : memref<9x8x8xbf16, #tpu.memory_space<vmem>>, vector<1x8x8xbf16>
    %32 = vector.shape_cast %31 : vector<1x8x8xbf16> to vector<8x8xbf16>
    %33 = vector.extract_strided_slice %4 {offsets = [0, 18], sizes = [8, 256], strides = [1, 1]} : vector<8x384xbf16> to vector<8x256xbf16>
    %cst_23 = arith.constant dense<0.000000e+00> : vector<8x256xf32>
    %34 = tpu.matmul %32, %33, %cst_23 {dimension_numbers = #tpu.dot_dimension_numbers<[1], [0], [0], [1], [0, 0, 1, 1], [], []>} : vector<8x8xbf16>, vector<8x256xbf16>, vector<8x256xf32> -> vector<8x256xf32>
    %35 = arith.addf %30, %34 : vector<8x256xf32>
    %c6 = arith.constant 6 : index
    %c0_24 = arith.constant 0 : index
    %c0_25 = arith.constant 0 : index
    %36 = vector.load %arg4[%c6, %c0_24, %c0_25] : memref<9x8x8xbf16, #tpu.memory_space<vmem>>, vector<1x8x8xbf16>
    %37 = vector.shape_cast %36 : vector<1x8x8xbf16> to vector<8x8xbf16>
    %38 = vector.extract_strided_slice %4 {offsets = [0, 32], sizes = [8, 256], strides = [1, 1]} : vector<8x384xbf16> to vector<8x256xbf16>
    %cst_26 = arith.constant dense<0.000000e+00> : vector<8x256xf32>
    %39 = tpu.matmul %37, %38, %cst_26 {dimension_numbers = #tpu.dot_dimension_numbers<[1], [0], [0], [1], [0, 0, 1, 1], [], []>} : vector<8x8xbf16>, vector<8x256xbf16>, vector<8x256xf32> -> vector<8x256xf32>
    %40 = arith.addf %35, %39 : vector<8x256xf32>
    %c7 = arith.constant 7 : index
    %c0_27 = arith.constant 0 : index
    %c0_28 = arith.constant 0 : index
    %41 = vector.load %arg4[%c7, %c0_27, %c0_28] : memref<9x8x8xbf16, #tpu.memory_space<vmem>>, vector<1x8x8xbf16>
    %42 = vector.shape_cast %41 : vector<1x8x8xbf16> to vector<8x8xbf16>
    %43 = vector.extract_strided_slice %4 {offsets = [0, 33], sizes = [8, 256], strides = [1, 1]} : vector<8x384xbf16> to vector<8x256xbf16>
    %cst_29 = arith.constant dense<0.000000e+00> : vector<8x256xf32>
    %44 = tpu.matmul %42, %43, %cst_29 {dimension_numbers = #tpu.dot_dimension_numbers<[1], [0], [0], [1], [0, 0, 1, 1], [], []>} : vector<8x8xbf16>, vector<8x256xbf16>, vector<8x256xf32> -> vector<8x256xf32>
    %45 = arith.addf %40, %44 : vector<8x256xf32>
    %c8 = arith.constant 8 : index
    %c0_30 = arith.constant 0 : index
    %c0_31 = arith.constant 0 : index
    %46 = vector.load %arg4[%c8, %c0_30, %c0_31] : memref<9x8x8xbf16, #tpu.memory_space<vmem>>, vector<1x8x8xbf16>
    %47 = vector.shape_cast %46 : vector<1x8x8xbf16> to vector<8x8xbf16>
    %48 = vector.extract_strided_slice %4 {offsets = [0, 34], sizes = [8, 256], strides = [1, 1]} : vector<8x384xbf16> to vector<8x256xbf16>
    %cst_32 = arith.constant dense<0.000000e+00> : vector<8x256xf32>
    %49 = tpu.matmul %47, %48, %cst_32 {dimension_numbers = #tpu.dot_dimension_numbers<[1], [0], [0], [1], [0, 0, 1, 1], [], []>} : vector<8x8xbf16>, vector<8x256xbf16>, vector<8x256xf32> -> vector<8x256xf32>
    %50 = arith.addf %45, %49 : vector<8x256xf32>
    %c0_33 = arith.constant 0 : index
    %c0_34 = arith.constant 0 : index
    %c0_35 = arith.constant 0 : index
    %51 = vector.load %arg5[%c0_33, %c0_34, %c0_35] : memref<1x8x256xf32, #tpu.memory_space<vmem>>, vector<1x8x256xf32>
    %52 = vector.shape_cast %51 : vector<1x8x256xf32> to vector<8x256xf32>
    %53 = vector.shape_cast %50 : vector<8x256xf32> to vector<1x8x256xf32>
    tpu.vector_store %arg5[%c0_33, %c0_34, %c0_35], %53 {strides = array<i32>} : memref<1x8x256xf32, #tpu.memory_space<vmem>>, vector<1x8x256xf32>,
    return
  }
  func.func @transform_0(%arg0: i32, %arg1: i32) -> (i32, i32, i32) {
    %c0_i32 = arith.constant 0 : i32
    %c0_i32_0 = arith.constant 0 : i32
    return %arg0, %c0_i32, %arg1 : i32, i32, i32
  }
  func.func @transform_1(%arg0: i32, %arg1: i32) -> (i32, i32, i32) {
    %c1_i32 = arith.constant 1 : i32
    %0 = arith.addi %arg1, %c1_i32 : i32
    %c2_i32 = arith.constant 2 : i32
    %1 = arith.muli %0, %c2_i32 : i32
    %c0_i32 = arith.constant 0 : i32
    %c0_i32_0 = arith.constant 0 : i32
    return %arg0, %c0_i32, %1 : i32, i32, i32
  }
  func.func @transform_2(%arg0: i32, %arg1: i32) -> (i32, i32, i32) {
    %c0_i32 = arith.constant 0 : i32
    %c0_i32_0 = arith.constant 0 : i32
    %c0_i32_1 = arith.constant 0 : i32
    %c0_i32_2 = arith.constant 0 : i32
    return %c0_i32, %c0_i32_0, %c0_i32_1 : i32, i32, i32
  }
  func.func @transform_3(%arg0: i32, %arg1: i32) -> (i32, i32, i32) {
    %c0_i32 = arith.constant 0 : i32
    %c0_i32_0 = arith.constant 0 : i32
    return %arg0, %c0_i32, %arg1 : i32, i32, i32
  }
}

</mosaic_0001>

<llo_original>
// kernel: tpu_custom_call.1
$region0: #{tpu_custom_call.1}
  #allocation0 [shape = 'u32[]', space=smem, size = 0x4, offset = 0x4, fixed_abs, tag = 'smem constant byte address 0x4 - core index']
  #allocation1 [shape = 'u32[144,128]{1,0:T(1,128)}', space=vmem, size = 0x12000, scoped, tag = 'internal scratch']
  %s0 = inlined_call_operand.vmem [shape: bf16[2,8,512], index: 0, kind: input, shape index: {}]
  %s1 = inlined_call_operand.vmem [shape: bf16[2,8,512], index: 1, kind: input, shape index: {}]
  %s2 = inlined_call_operand.vmem [shape: bf16[9,8,8], index: 2, kind: input, shape index: {}]
  %s3 = inlined_call_operand.hbm [shape: f32[2,8,256], index: 3, kind: output, shape index: {}]
  %s4 = sld [smem:[#allocation0]]
  $region45: #{tpu_custom_call.1} parent=0
    _
  %s6 = ssub.s32 1, %s4
  %s7 = scalar_select 0, %s6, %s4
  $region1: #{tpu_custom_call.1} parent=0
    #allocation2 [shape = 'u8[16384]{0}', space=vmem, size = 0x4000, scoped, tag = 'output window, operand 0']
    #allocation3 [shape = 's32[2]{0}', space=sflag, size = 0x8, scoped, tag = 'scoped memory for tpu_custom_call.1']
    %8 = vsyncpa [#allocation3], 0
    %s9 = scalar_lea.sflag [#allocation3], 1
    %10 = vsyncpa %s9, 0
    loop: start=0, step=1, limit=4
    $region2: #{tpu_custom_call.1} parent=1 // loop_pre_header
      _
    $region3: #{tpu_custom_call.1} parent=1 // loop_header
      %s12 = sphi 0, %s16
      %p13 = scmp.ge.s32.totalorder %s12, 4
      %s19 = sphi 0, %s31
      %s20 = sphi 0, %s27
      %s21 = sphi 0, %s19
      %s22 = sphi 0, %s20
      %s23 = sphi 0, %s21
      %s24 = sphi 0, %s22
      %s36 = sphi 0, %s38
      %s39 = sphi 0, %s36
      %s40 = sphi 0, %s39
      %s56 = sphi 0, %s40
      %s68 = sphi 0, %s70
      %s71 = sphi 0, %s68
      %s72 = sphi 0, %s71
      %s88 = sphi 0, %s72
      %s92 = sphi 0, %s92
      %s94 = sphi 0, %s92
      %s95 = sphi 0, %s94
      %s109 = sphi 0, %s95
      %s117 = sphi 0, %s119
      %s120 = sphi 0, %s117
      %s121 = sphi 0, %s120
      %s137 = sphi 0, %s121
    $region4: #{tpu_custom_call.1} parent=1 // loop_header_branch
      %15 = sbr.rel (%p13) target = $region8
    $region5: #{tpu_custom_call.1} parent=1 // loop_body
      %s17 = ssub.s32 %s12, 1
      %s18 = ssub.s32 %s12, 2
      %s25 = sadd.s32 1, %s20
      %p26 = scmp.ge.s32.totalorder %s25, 1
      %s27 = scalar_select %p26, 0, %s25
      %s28 = sadd.s32 1, %s19
      %s29 = scalar_select %p26, %s28, %s19
      %p30 = scmp.ge.s32.totalorder %s29, 2
      %s31 = scalar_select %p30, 0, %s29
      %s32 = ssub.s32 %s19, %s31
      %s33 = ssub.s32 %s20, %s27
      %s34 = sor.u32 %s32, %s33
      %p35 = scmp.eq.s32.totalorder %s34, 0
      %s37 = sadd.s32 %s36, 1
      %s38 = scalar_select %p35, %s36, %s37
      %p41 = pneg %p35
      %p42 = scmp.eq.s32.totalorder %s12, 1
      %p43 = por %p41, %p42
      %p44 = scmp.ne.s32.totalorder %s36, %s39
      %p45 = scmp.eq.s32.totalorder %s12, 0
      %p46 = por %p44, %p45
      %p47 = scmp.ne.s32.totalorder %s36, %s39
      %p48 = scmp.eq.s32.totalorder %s17, 1
      %p49 = por %p47, %p48
      %p50 = scmp.ne.s32.totalorder %s39, %s40
      %p51 = scmp.eq.s32.totalorder %s17, 0
      %p52 = por %p50, %p51
      %p53 = scmp.ne.s32.totalorder %s39, %s40
      %p54 = scmp.eq.s32.totalorder %s18, 1
      %p55 = por %p53, %p54
      %p57 = scmp.ne.s32.totalorder %s40, %s56
      %p58 = scmp.eq.s32.totalorder %s18, 0
      %p59 = por %p57, %p58
      %s60 = sadd.s32 %s20, 1
      %s61 = smul.u32 %s60, 2
      %s62 = sadd.s32 %s27, 1
      %s63 = smul.u32 %s62, 2
      %s64 = ssub.s32 %s19, %s31
      %s65 = ssub.s32 %s61, %s63
      %s66 = sor.u32 %s64, %s65
      %p67 = scmp.eq.s32.totalorder %s66, 0
      %s69 = sadd.s32 %s68, 1
      %s70 = scalar_select %p67, %s68, %s69
      %p73 = pneg %p67
      %p74 = scmp.eq.s32.totalorder %s12, 1
      %p75 = por %p73, %p74
      %p76 = scmp.ne.s32.totalorder %s68, %s71
      %p77 = scmp.eq.s32.totalorder %s12, 0
      %p78 = por %p76, %p77
      %p79 = scmp.ne.s32.totalorder %s68, %s71
      %p80 = scmp.eq.s32.totalorder %s17, 1
      %p81 = por %p79, %p80
      %p82 = scmp.ne.s32.totalorder %s71, %s72
      %p83 = scmp.eq.s32.totalorder %s17, 0
      %p84 = por %p82, %p83
      %p85 = scmp.ne.s32.totalorder %s71, %s72
      %p86 = scmp.eq.s32.totalorder %s18, 1
      %p87 = por %p85, %p86
      %p89 = scmp.ne.s32.totalorder %s72, %s88
      %p90 = scmp.eq.s32.totalorder %s18, 0
      %p91 = por %p89, %p90
      %s93 = sadd.s32 %s92, 1
      %p96 = scmp.eq.s32.totalorder %s12, 1
      %p97 = scmp.ne.s32.totalorder %s92, %s94
      %p98 = scmp.eq.s32.totalorder %s12, 0
      %p99 = por %p97, %p98
      %p100 = scmp.ne.s32.totalorder %s92, %s94
      %p101 = scmp.eq.s32.totalorder %s17, 1
      %p102 = por %p100, %p101
      %p103 = scmp.ne.s32.totalorder %s94, %s95
      %p104 = scmp.eq.s32.totalorder %s17, 0
      %p105 = por %p103, %p104
      %p106 = scmp.ne.s32.totalorder %s94, %s95
      %p107 = scmp.eq.s32.totalorder %s18, 1
      %p108 = por %p106, %p107
      %p110 = scmp.ne.s32.totalorder %s95, %s109
      %p111 = scmp.eq.s32.totalorder %s18, 0
      %p112 = por %p110, %p111
      %s113 = ssub.s32 %s19, %s31
      %s114 = ssub.s32 %s20, %s27
      %s115 = sor.u32 %s113, %s114
      %p116 = scmp.eq.s32.totalorder %s115, 0
      %s118 = sadd.s32 %s117, 1
      %s119 = scalar_select %p116, %s117, %s118
      %p122 = pneg %p116
      %p123 = scmp.eq.s32.totalorder %s12, 1
      %p124 = por %p122, %p123
      %p125 = scmp.ne.s32.totalorder %s117, %s120
      %p126 = scmp.eq.s32.totalorder %s12, 0
      %p127 = por %p125, %p126
      %p128 = scmp.ne.s32.totalorder %s117, %s120
      %p129 = scmp.eq.s32.totalorder %s17, 1
      %p130 = por %p128, %p129
      %p131 = scmp.ne.s32.totalorder %s120, %s121
      %p132 = scmp.eq.s32.totalorder %s17, 0
      %p133 = por %p131, %p132
      %p134 = scmp.ne.s32.totalorder %s120, %s121
      %p135 = scmp.eq.s32.totalorder %s18, 1
      %p136 = por %p134, %p135
      %p138 = scmp.ne.s32.totalorder %s121, %s137
      %p139 = scmp.eq.s32.totalorder %s18, 0
      %p140 = por %p138, %p139
      %p141 = scmp.le.s32.totalorder 1, %s12
      %p142 = scmp.lt.s32.totalorder %s12, 3
      %p143 = pnand %p141, %p142
      %p144 = pneg %p143
      // Predicated region
      $region9: #{tpu_custom_call.1} parent=5 // pred_check
        _
      $region10: #{tpu_custom_call.1} parent=5 // pred_check_branch
        %146 = sbr.rel (%p143) target = $region12
      $region11: #{tpu_custom_call.1} parent=5 // pred_region
        %s147 = ssub.s32 %s12, 1
        // Predicated region
        $region13: #{tpu_custom_call.1} parent=11 // pred_check
          %p148 = pneg %p105
        $region14: #{tpu_custom_call.1} parent=11 // pred_check_branch
          %150 = sbr.rel (%p148) target = $region16
        $region15: #{tpu_custom_call.1} parent=11 // pred_region
          _
        $region16: #{tpu_custom_call.1} parent=11 // pred_fallthru
          _
      $region12: #{tpu_custom_call.1} parent=5 // pred_fallthru
        _
      %p151 = scmp.lt.s32.totalorder %s12, 2
      // Predicated region
      $region17: #{tpu_custom_call.1} parent=5 // pred_check
        %p152 = pneg %p151
      $region18: #{tpu_custom_call.1} parent=5 // pred_check_branch
        %154 = sbr.rel (%p152) target = $region20
      $region19: #{tpu_custom_call.1} parent=5 // pred_region
        // Predicated region
        $region21: #{tpu_custom_call.1} parent=19 // pred_check
          %p155 = pneg %p46
        $region22: #{tpu_custom_call.1} parent=19 // pred_check_branch
          %157 = sbr.rel (%p155) target = $region24
        $region23: #{tpu_custom_call.1} parent=19 // pred_region
          %s158 = smul.u32 2, %s20
          %p159 = scmp.lt.s32.totalorder %s19, 1
          %s160 = scalar_select %p159, %s19, 1
          %p161 = scmp.lt.s32.totalorder %s158, 3
          %s162 = scalar_select %p161, %s158, 3
          %s163 = smul.addr %s160, 4
          %s164 = sadd.s32 %s162, %s163
          %s165 = smul.addr %s164, 4
          %s166 = scalar_lea.vmem %s0, %s165
          %s167 = smul.u32 2, %s20
        $region24: #{tpu_custom_call.1} parent=19 // pred_fallthru
          _
        // Predicated region
        $region25: #{tpu_custom_call.1} parent=19 // pred_check
          %p168 = pneg %p78
        $region26: #{tpu_custom_call.1} parent=19 // pred_check_branch
          %170 = sbr.rel (%p168) target = $region28
        $region27: #{tpu_custom_call.1} parent=19 // pred_region
          %s171 = sadd.s32 %s20, 1
          %s172 = smul.u32 %s171, 2
          %p173 = scmp.lt.s32.totalorder %s19, 1
          %s174 = scalar_select %p173, %s19, 1
          %p175 = scmp.lt.s32.totalorder %s172, 3
          %s176 = scalar_select %p175, %s172, 3
          %s177 = smul.addr %s174, 4
          %s178 = sadd.s32 %s176, %s177
          %s179 = smul.addr %s178, 4
          %s180 = scalar_lea.vmem %s1, %s179
          %s181 = sadd.s32 %s20, 1
          %s182 = smul.u32 %s181, 2
        $region28: #{tpu_custom_call.1} parent=19 // pred_fallthru
          _
      $region20: #{tpu_custom_call.1} parent=5 // pred_fallthru
        _
      %p183 = scmp.le.s32.totalorder 1, %s12
      %p184 = scmp.lt.s32.totalorder %s12, 3
      %p185 = pnand %p183, %p184
      %p186 = pneg %p185
      // Predicated region
      $region29: #{tpu_custom_call.1} parent=5 // pred_check
        _
      $region30: #{tpu_custom_call.1} parent=5 // pred_check_branch
        %188 = sbr.rel (%p185) target = $region32
      $region31: #{tpu_custom_call.1} parent=5 // pred_region
        %s189 = ssub.s32 %s12, 1
        %s190 = smul.u32 2, %s22
        %p191 = scmp.lt.s32.totalorder %s21, 1
        %s192 = scalar_select %p191, %s21, 1
        %p193 = scmp.lt.s32.totalorder %s190, 3
        %s194 = scalar_select %p193, %s190, 3
        %s195 = smul.addr %s192, 4
        %s196 = sadd.s32 %s194, %s195
        %s197 = smul.addr %s196, 4
        %s198 = scalar_lea.vmem %s0, %s197
        %p199 = pneg %p52
        %p200 = pneg %p49
        %s201 = sadd.s32 %s22, 1
        %s202 = smul.u32 %s201, 2
        %p203 = scmp.lt.s32.totalorder %s21, 1
        %s204 = scalar_select %p203, %s21, 1
        %p205 = scmp.lt.s32.totalorder %s202, 3
        %s206 = scalar_select %p205, %s202, 3
        %s207 = smul.addr %s204, 4
        %s208 = sadd.s32 %s206, %s207
        %s209 = smul.addr %s208, 4
        %s210 = scalar_lea.vmem %s1, %s209
        %p211 = pneg %p84
        %p212 = pneg %p81
        %p213 = pneg %p105
        %p214 = pneg %p102
        %p215 = pneg %p133
        %p216 = pneg %p130
        %s217 = sand.u32 %s120, 1
        %s218 = scalar_lea.sflag [#allocation3], %s217
        %s219 = sand.u32 %s120, 1
        %s220 = smul.addr %s219, 16
        %s221 = scalar_lea.vmem [#allocation2], %s220
        %s222 = smul.u32 2, %s22
        %p223 = scmp.lt.s32.totalorder %s21, 1
        %s224 = scalar_select %p223, %s21, 1
        %p225 = scmp.lt.s32.totalorder %s222, 3
        %s226 = scalar_select %p225, %s222, 3
        %s227 = smul.addr %s224, 4
        %s228 = sadd.s32 %s226, %s227
        %s229 = smul.addr %s228, 4
        %s230 = scalar_lea.vmem %s0, %s229
        %s231 = smul.u32 2, %s22
        %s232 = sadd.s32 %s22, 1
        %s233 = smul.u32 %s232, 2
        %p234 = scmp.lt.s32.totalorder %s21, 1
        %s235 = scalar_select %p234, %s21, 1
        %p236 = scmp.lt.s32.totalorder %s233, 3
        %s237 = scalar_select %p236, %s233, 3
        %s238 = smul.addr %s235, 4
        %s239 = sadd.s32 %s237, %s238
        %s240 = smul.addr %s239, 4
        %s241 = scalar_lea.vmem %s1, %s240
        %s242 = sadd.s32 %s22, 1
        %s243 = smul.u32 %s242, 2
        %s244 = smul.u32 2, %s22
        %v246 = vld [vmem:[%s230] sm:$0xff]
        %v247 = vld [vmem:[%s241] sm:$0xf]
        %v249 = vunpack.c.l.b16 %v246
        %v250 = vunpack.c.h.b16 %v246
        %v251 = vpack.c.b16 %v249, %v249
        %v252 = vpack.c.b16 %v250, %v250
        %v253 = vld [vmem:[%s2] sm:$0xf]
        %s254 = scalar_lea.vmem %s2, 4
        %v255 = vld [vmem:[%s254] sm:$0xf]
        %257 = vrot.lane.b32.xlu0 %v251, 127
        %v258 = vpop.permute.xlu0 %257
        %259 = vrot.lane.b32.xlu0 %v252, 127
        %v260 = vpop.permute.xlu0 %259
        %261 = vrot.lane.b32.xlu0 %v247, 127
        %v262 = vpop.permute.xlu0 %261
        %vm263 = vcmask 1039360
        %v264 = vsel %vm263, %v258, %v260
        %v265 = vsel %vm263, %v260, %v262
        %vm266 = vcmask 64512
        %v268 = vsel %vm266, %v255, 0
        %vm270 = vcmask 1043456
        %v272 = vsel %vm270, %v264, 0
        %v275 = vsel %vm270, %v265, 0
        %277 = vmatprep.subr.bf16.mxu0 %v275
        %278 = vmatpush1.bf16.msra.mxu0 %v272
        %279 = vmatprep.subr.bf16.mxu0 0
        %280 = vmatpush1.bf16.msra.mxu0 0
        %281 = vmatprep.subr.bf16.mxu0 0
        %282 = vmatpush1.bf16.msra.mxu0 0
        %283 = vmatprep.subr.bf16.mxu0 0
        %284 = vmatpush1.bf16.msra.mxu0 0
        %285 = vmatprep.subr.bf16.mxu0 0
        %286 = vmatpush1.bf16.msra.mxu0 0
        %287 = vmatprep.subr.bf16.mxu0 0
        %288 = vmatpush1.bf16.msra.mxu0 0
        %289 = vmatprep.subr.bf16.mxu0 0
        %290 = vmatpush1.bf16.msra.mxu0 0
        %291 = vmatprep.subr.bf16.mxu0 0
        %292 = vmatpush1.bf16.msra.mxu0 0
        %293 = vmatprep.subr.bf16.mxu0 0
        %294 = vmatpush1.bf16.msra.mxu0 0
        %295 = vmatprep.subr.bf16.mxu0 0
        %296 = vmatpush1.bf16.msra.mxu0 0
        %297 = vmatprep.subr.bf16.mxu0 0
        %298 = vmatpush1.bf16.msra.mxu0 0
        %299 = vmatprep.subr.bf16.mxu0 0
        %300 = vmatpush1.bf16.msra.mxu0 0
        %301 = vmatprep.subr.bf16.mxu0 0
        %302 = vmatpush1.bf16.msra.mxu0 0
        %303 = vmatprep.subr.bf16.mxu0 0
        %304 = vmatpush1.bf16.msra.mxu0 0
        %305 = vmatprep.subr.bf16.mxu0 0
        %306 = vmatpush1.bf16.msra.mxu0 0
        %307 = vmatprep.subr.bf16.mxu0 0
        %308 = vmatpush1.bf16.msra.mxu0 0
        %309 = vmatprep.mubr.bf16.mxu0 0
        %310 = vmatmul.mubr.bf16.gmra.mrb[0].mxu0 %v268
        %v311 = vpop.f32.mrb[0].mxu0
        %v312 = vadd.f32 0.0, %v311
        %v313 = vpop.f32.mrb[0].mxu0
        %v314 = vadd.f32 0.0, %v313
        %v315 = vpop.f32.mrb[0].mxu0
        %v316 = vpop.f32.mrb[0].mxu0
        %317 = vdwg.mxu0
        %v319 = vsel %vm266, %v253, 0
        %v322 = vsel %vm270, %v251, 0
        %v325 = vsel %vm270, %v252, 0
        %327 = vmatprep.subr.bf16.mxu0 %v325
        %328 = vmatpush1.bf16.msra.mxu0 %v322
        %329 = vmatprep.subr.bf16.mxu0 0
        %330 = vmatpush1.bf16.msra.mxu0 0
        %331 = vmatprep.subr.bf16.mxu0 0
        %332 = vmatpush1.bf16.msra.mxu0 0
        %333 = vmatprep.subr.bf16.mxu0 0
        %334 = vmatpush1.bf16.msra.mxu0 0
        %335 = vmatprep.subr.bf16.mxu0 0
        %336 = vmatpush1.bf16.msra.mxu0 0
        %337 = vmatprep.subr.bf16.mxu0 0
        %338 = vmatpush1.bf16.msra.mxu0 0
        %339 = vmatprep.subr.bf16.mxu0 0
        %340 = vmatpush1.bf16.msra.mxu0 0
        %341 = vmatprep.subr.bf16.mxu0 0
        %342 = vmatpush1.bf16.msra.mxu0 0
        %343 = vmatprep.subr.bf16.mxu0 0
        %344 = vmatpush1.bf16.msra.mxu0 0
        %345 = vmatprep.subr.bf16.mxu0 0
        %346 = vmatpush1.bf16.msra.mxu0 0
        %347 = vmatprep.subr.bf16.mxu0 0
        %348 = vmatpush1.bf16.msra.mxu0 0
        %349 = vmatprep.subr.bf16.mxu0 0
        %350 = vmatpush1.bf16.msra.mxu0 0
        %351 = vmatprep.subr.bf16.mxu0 0
        %352 = vmatpush1.bf16.msra.mxu0 0
        %353 = vmatprep.subr.bf16.mxu0 0
        %354 = vmatpush1.bf16.msra.mxu0 0
        %355 = vmatprep.subr.bf16.mxu0 0
        %356 = vmatpush1.bf16.msra.mxu0 0
        %357 = vmatprep.subr.bf16.mxu0 0
        %358 = vmatpush1.bf16.msra.mxu0 0
        %359 = vmatprep.mubr.bf16.mxu0 0
        %360 = vmatmul.mubr.bf16.gmra.mrb[0].mxu0 %v319
        %v361 = vpop.f32.mrb[0].mxu0
        %v362 = vadd.f32 %v312, %v361
        %v363 = vpop.f32.mrb[0].mxu0
        %v364 = vadd.f32 %v314, %v363
        %v365 = vpop.f32.mrb[0].mxu0
        %v366 = vpop.f32.mrb[0].mxu0
        %367 = vdwg.mxu0
        %s368 = scalar_lea.vmem %s2, 8
        %v369 = vld [vmem:[%s368] sm:$0xf]
        %370 = vrot.lane.b32.xlu0 %v251, 126
        %v371 = vpop.permute.xlu0 %370
        %372 = vrot.lane.b32.xlu0 %v252, 126
        %v373 = vpop.permute.xlu0 %372
        %374 = vrot.lane.b32.xlu0 %v247, 126
        %v375 = vpop.permute.xlu0 %374
        %vm376 = vcmask 1031168
        %v377 = vsel %vm376, %v371, %v373
        %v378 = vsel %vm376, %v373, %v375
        %v380 = vsel %vm266, %v369, 0
        %v383 = vsel %vm270, %v377, 0
        %v386 = vsel %vm270, %v378, 0
        %388 = vmatprep.subr.bf16.mxu0 %v386
        %389 = vmatpush1.bf16.msra.mxu0 %v383
        %390 = vmatprep.subr.bf16.mxu0 0
        %391 = vmatpush1.bf16.msra.mxu0 0
        %392 = vmatprep.subr.bf16.mxu0 0
        %393 = vmatpush1.bf16.msra.mxu0 0
        %394 = vmatprep.subr.bf16.mxu0 0
        %395 = vmatpush1.bf16.msra.mxu0 0
        %396 = vmatprep.subr.bf16.mxu0 0
        %397 = vmatpush1.bf16.msra.mxu0 0
        %398 = vmatprep.subr.bf16.mxu0 0
        %399 = vmatpush1.bf16.msra.mxu0 0
        %400 = vmatprep.subr.bf16.mxu0 0
        %401 = vmatpush1.bf16.msra.mxu0 0
        %402 = vmatprep.subr.bf16.mxu0 0
        %403 = vmatpush1.bf16.msra.mxu0 0
        %404 = vmatprep.subr.bf16.mxu0 0
        %405 = vmatpush1.bf16.msra.mxu0 0
        %406 = vmatprep.subr.bf16.mxu0 0
        %407 = vmatpush1.bf16.msra.mxu0 0
        %408 = vmatprep.subr.bf16.mxu0 0
        %409 = vmatpush1.bf16.msra.mxu0 0
        %410 = vmatprep.subr.bf16.mxu0 0
        %411 = vmatpush1.bf16.msra.mxu0 0
        %412 = vmatprep.subr.bf16.mxu0 0
        %413 = vmatpush1.bf16.msra.mxu0 0
        %414 = vmatprep.subr.bf16.mxu0 0
        %415 = vmatpush1.bf16.msra.mxu0 0
        %416 = vmatprep.subr.bf16.mxu0 0
        %417 = vmatpush1.bf16.msra.mxu0 0
        %418 = vmatprep.subr.bf16.mxu0 0
        %419 = vmatpush1.bf16.msra.mxu0 0
        %420 = vmatprep.mubr.bf16.mxu0 0
        %421 = vmatmul.mubr.bf16.gmra.mrb[0].mxu0 %v380
        %v422 = vpop.f32.mrb[0].mxu0
        %v423 = vadd.f32 0.0, %v422
        %v424 = vpop.f32.mrb[0].mxu0
        %v425 = vadd.f32 0.0, %v424
        %v426 = vpop.f32.mrb[0].mxu0
        %v427 = vpop.f32.mrb[0].mxu0
        %428 = vdwg.mxu0
        %v429 = vadd.f32 %v362, %v423
        %v430 = vadd.f32 %v364, %v425
        %s431 = scalar_lea.vmem %s2, 12
        %v432 = vld [vmem:[%s431] sm:$0xf]
        %433 = vrot.lane.b32.xlu0 %v251, 112
        %v434 = vpop.permute.xlu0 %433
        %435 = vrot.lane.b32.xlu0 %v252, 112
        %v436 = vpop.permute.xlu0 %435
        %437 = vrot.lane.b32.xlu0 %v247, 112
        %v438 = vpop.permute.xlu0 %437
        %vm439 = vcmask 916480
        %v440 = vsel %vm439, %v434, %v436
        %v441 = vsel %vm439, %v436, %v438
        %v443 = vsel %vm266, %v432, 0
        %v446 = vsel %vm270, %v440, 0
        %v449 = vsel %vm270, %v441, 0
        %451 = vmatprep.subr.bf16.mxu0 %v449
        %452 = vmatpush1.bf16.msra.mxu0 %v446
        %453 = vmatprep.subr.bf16.mxu0 0
        %454 = vmatpush1.bf16.msra.mxu0 0
        %455 = vmatprep.subr.bf16.mxu0 0
        %456 = vmatpush1.bf16.msra.mxu0 0
        %457 = vmatprep.subr.bf16.mxu0 0
        %458 = vmatpush1.bf16.msra.mxu0 0
        %459 = vmatprep.subr.bf16.mxu0 0
        %460 = vmatpush1.bf16.msra.mxu0 0
        %461 = vmatprep.subr.bf16.mxu0 0
        %462 = vmatpush1.bf16.msra.mxu0 0
        %463 = vmatprep.subr.bf16.mxu0 0
        %464 = vmatpush1.bf16.msra.mxu0 0
        %465 = vmatprep.subr.bf16.mxu0 0
        %466 = vmatpush1.bf16.msra.mxu0 0
        %467 = vmatprep.subr.bf16.mxu0 0
        %468 = vmatpush1.bf16.msra.mxu0 0
        %469 = vmatprep.subr.bf16.mxu0 0
        %470 = vmatpush1.bf16.msra.mxu0 0
        %471 = vmatprep.subr.bf16.mxu0 0
        %472 = vmatpush1.bf16.msra.mxu0 0
        %473 = vmatprep.subr.bf16.mxu0 0
        %474 = vmatpush1.bf16.msra.mxu0 0
        %475 = vmatprep.subr.bf16.mxu0 0
        %476 = vmatpush1.bf16.msra.mxu0 0
        %477 = vmatprep.subr.bf16.mxu0 0
        %478 = vmatpush1.bf16.msra.mxu0 0
        %479 = vmatprep.subr.bf16.mxu0 0
        %480 = vmatpush1.bf16.msra.mxu0 0
        %481 = vmatprep.subr.bf16.mxu0 0
        %482 = vmatpush1.bf16.msra.mxu0 0
        %483 = vmatprep.mubr.bf16.mxu0 0
        %484 = vmatmul.mubr.bf16.gmra.mrb[0].mxu0 %v443
        %v485 = vpop.f32.mrb[0].mxu0
        %v486 = vadd.f32 0.0, %v485
        %v487 = vpop.f32.mrb[0].mxu0
        %v488 = vadd.f32 0.0, %v487
        %v489 = vpop.f32.mrb[0].mxu0
        %v490 = vpop.f32.mrb[0].mxu0
        %491 = vdwg.mxu0
        %v492 = vadd.f32 %v429, %v486
        %v493 = vadd.f32 %v430, %v488
        %s494 = scalar_lea.vmem %s2, 16
        %v495 = vld [vmem:[%s494] sm:$0xf]
        %496 = vrot.lane.b32.xlu0 %v251, 111
        %v497 = vpop.permute.xlu0 %496
        %498 = vrot.lane.b32.xlu0 %v252, 111
        %v499 = vpop.permute.xlu0 %498
        %500 = vrot.lane.b32.xlu0 %v247, 111
        %v501 = vpop.permute.xlu0 %500
        %vm502 = vcmask 908288
        %v503 = vsel %vm502, %v497, %v499
        %v504 = vsel %vm502, %v499, %v501
        %v506 = vsel %vm266, %v495, 0
        %v509 = vsel %vm270, %v503, 0
        %v512 = vsel %vm270, %v504, 0
        %514 = vmatprep.subr.bf16.mxu0 %v512
        %515 = vmatpush1.bf16.msra.mxu0 %v509
        %516 = vmatprep.subr.bf16.mxu0 0
        %517 = vmatpush1.bf16.msra.mxu0 0
        %518 = vmatprep.subr.bf16.mxu0 0
        %519 = vmatpush1.bf16.msra.mxu0 0
        %520 = vmatprep.subr.bf16.mxu0 0
        %521 = vmatpush1.bf16.msra.mxu0 0
        %522 = vmatprep.subr.bf16.mxu0 0
        %523 = vmatpush1.bf16.msra.mxu0 0
        %524 = vmatprep.subr.bf16.mxu0 0
        %525 = vmatpush1.bf16.msra.mxu0 0
        %526 = vmatprep.subr.bf16.mxu0 0
        %527 = vmatpush1.bf16.msra.mxu0 0
        %528 = vmatprep.subr.bf16.mxu0 0
        %529 = vmatpush1.bf16.msra.mxu0 0
        %530 = vmatprep.subr.bf16.mxu0 0
        %531 = vmatpush1.bf16.msra.mxu0 0
        %532 = vmatprep.subr.bf16.mxu0 0
        %533 = vmatpush1.bf16.msra.mxu0 0
        %534 = vmatprep.subr.bf16.mxu0 0
        %535 = vmatpush1.bf16.msra.mxu0 0
        %536 = vmatprep.subr.bf16.mxu0 0
        %537 = vmatpush1.bf16.msra.mxu0 0
        %538 = vmatprep.subr.bf16.mxu0 0
        %539 = vmatpush1.bf16.msra.mxu0 0
        %540 = vmatprep.subr.bf16.mxu0 0
        %541 = vmatpush1.bf16.msra.mxu0 0
        %542 = vmatprep.subr.bf16.mxu0 0
        %543 = vmatpush1.bf16.msra.mxu0 0
        %544 = vmatprep.subr.bf16.mxu0 0
        %545 = vmatpush1.bf16.msra.mxu0 0
        %546 = vmatprep.mubr.bf16.mxu0 0
        %547 = vmatmul.mubr.bf16.gmra.mrb[0].mxu0 %v506
        %v548 = vpop.f32.mrb[0].mxu0
        %v549 = vadd.f32 0.0, %v548
        %v550 = vpop.f32.mrb[0].mxu0
        %v551 = vadd.f32 0.0, %v550
        %v552 = vpop.f32.mrb[0].mxu0
        %v553 = vpop.f32.mrb[0].mxu0
        %554 = vdwg.mxu0
        %v555 = vadd.f32 %v492, %v549
        %v556 = vadd.f32 %v493, %v551
        %s557 = scalar_lea.vmem %s2, 20
        %v558 = vld [vmem:[%s557] sm:$0xf]
        %559 = vrot.lane.b32.xlu0 %v251, 110
        %v560 = vpop.permute.xlu0 %559
        %561 = vrot.lane.b32.xlu0 %v252, 110
        %v562 = vpop.permute.xlu0 %561
        %563 = vrot.lane.b32.xlu0 %v247, 110
        %v564 = vpop.permute.xlu0 %563
        %vm565 = vcmask 900096
        %v566 = vsel %vm565, %v560, %v562
        %v567 = vsel %vm565, %v562, %v564
        %v569 = vsel %vm266, %v558, 0
        %v572 = vsel %vm270, %v566, 0
        %v575 = vsel %vm270, %v567, 0
        %577 = vmatprep.subr.bf16.mxu0 %v575
        %578 = vmatpush1.bf16.msra.mxu0 %v572
        %579 = vmatprep.subr.bf16.mxu0 0
        %580 = vmatpush1.bf16.msra.mxu0 0
        %581 = vmatprep.subr.bf16.mxu0 0
        %582 = vmatpush1.bf16.msra.mxu0 0
        %583 = vmatprep.subr.bf16.mxu0 0
        %584 = vmatpush1.bf16.msra.mxu0 0
        %585 = vmatprep.subr.bf16.mxu0 0
        %586 = vmatpush1.bf16.msra.mxu0 0
        %587 = vmatprep.subr.bf16.mxu0 0
        %588 = vmatpush1.bf16.msra.mxu0 0
        %589 = vmatprep.subr.bf16.mxu0 0
        %590 = vmatpush1.bf16.msra.mxu0 0
        %591 = vmatprep.subr.bf16.mxu0 0
        %592 = vmatpush1.bf16.msra.mxu0 0
        %593 = vmatprep.subr.bf16.mxu0 0
        %594 = vmatpush1.bf16.msra.mxu0 0
        %595 = vmatprep.subr.bf16.mxu0 0
        %596 = vmatpush1.bf16.msra.mxu0 0
        %597 = vmatprep.subr.bf16.mxu0 0
        %598 = vmatpush1.bf16.msra.mxu0 0
        %599 = vmatprep.subr.bf16.mxu0 0
        %600 = vmatpush1.bf16.msra.mxu0 0
        %601 = vmatprep.subr.bf16.mxu0 0
        %602 = vmatpush1.bf16.msra.mxu0 0
        %603 = vmatprep.subr.bf16.mxu0 0
        %604 = vmatpush1.bf16.msra.mxu0 0
        %605 = vmatprep.subr.bf16.mxu0 0
        %606 = vmatpush1.bf16.msra.mxu0 0
        %607 = vmatprep.subr.bf16.mxu0 0
        %608 = vmatpush1.bf16.msra.mxu0 0
        %609 = vmatprep.mubr.bf16.mxu0 0
        %610 = vmatmul.mubr.bf16.gmra.mrb[0].mxu0 %v569
        %v611 = vpop.f32.mrb[0].mxu0
        %v612 = vadd.f32 0.0, %v611
        %v613 = vpop.f32.mrb[0].mxu0
        %v614 = vadd.f32 0.0, %v613
        %v615 = vpop.f32.mrb[0].mxu0
        %v616 = vpop.f32.mrb[0].mxu0
        %617 = vdwg.mxu0
        %v618 = vadd.f32 %v555, %v612
        %v619 = vadd.f32 %v556, %v614
        %s620 = scalar_lea.vmem %s2, 24
        %v621 = vld [vmem:[%s620] sm:$0xf]
        %622 = vrot.lane.b32.xlu0 %v251, 96
        %v623 = vpop.permute.xlu0 %622
        %624 = vrot.lane.b32.xlu0 %v252, 96
        %v625 = vpop.permute.xlu0 %624
        %626 = vrot.lane.b32.xlu0 %v247, 96
        %v627 = vpop.permute.xlu0 %626
        %vm628 = vcmask 785408
        %v629 = vsel %vm628, %v623, %v625
        %v630 = vsel %vm628, %v625, %v627
        %v632 = vsel %vm266, %v621, 0
        %v635 = vsel %vm270, %v629, 0
        %v638 = vsel %vm270, %v630, 0
        %640 = vmatprep.subr.bf16.mxu0 %v638
        %641 = vmatpush1.bf16.msra.mxu0 %v635
        %642 = vmatprep.subr.bf16.mxu0 0
        %643 = vmatpush1.bf16.msra.mxu0 0
        %644 = vmatprep.subr.bf16.mxu0 0
        %645 = vmatpush1.bf16.msra.mxu0 0
        %646 = vmatprep.subr.bf16.mxu0 0
        %647 = vmatpush1.bf16.msra.mxu0 0
        %648 = vmatprep.subr.bf16.mxu0 0
        %649 = vmatpush1.bf16.msra.mxu0 0
        %650 = vmatprep.subr.bf16.mxu0 0
        %651 = vmatpush1.bf16.msra.mxu0 0
        %652 = vmatprep.subr.bf16.mxu0 0
        %653 = vmatpush1.bf16.msra.mxu0 0
        %654 = vmatprep.subr.bf16.mxu0 0
        %655 = vmatpush1.bf16.msra.mxu0 0
        %656 = vmatprep.subr.bf16.mxu0 0
        %657 = vmatpush1.bf16.msra.mxu0 0
        %658 = vmatprep.subr.bf16.mxu0 0
        %659 = vmatpush1.bf16.msra.mxu0 0
        %660 = vmatprep.subr.bf16.mxu0 0
        %661 = vmatpush1.bf16.msra.mxu0 0
        %662 = vmatprep.subr.bf16.mxu0 0
        %663 = vmatpush1.bf16.msra.mxu0 0
        %664 = vmatprep.subr.bf16.mxu0 0
        %665 = vmatpush1.bf16.msra.mxu0 0
        %666 = vmatprep.subr.bf16.mxu0 0
        %667 = vmatpush1.bf16.msra.mxu0 0
        %668 = vmatprep.subr.bf16.mxu0 0
        %669 = vmatpush1.bf16.msra.mxu0 0
        %670 = vmatprep.subr.bf16.mxu0 0
        %671 = vmatpush1.bf16.msra.mxu0 0
        %672 = vmatprep.mubr.bf16.mxu0 0
        %673 = vmatmul.mubr.bf16.gmra.mrb[0].mxu0 %v632
        %v674 = vpop.f32.mrb[0].mxu0
        %v675 = vadd.f32 0.0, %v674
        %v676 = vpop.f32.mrb[0].mxu0
        %v677 = vadd.f32 0.0, %v676
        %v678 = vpop.f32.mrb[0].mxu0
        %v679 = vpop.f32.mrb[0].mxu0
        %680 = vdwg.mxu0
        %v681 = vadd.f32 %v618, %v675
        %v682 = vadd.f32 %v619, %v677
        %s683 = scalar_lea.vmem %s2, 28
        %v684 = vld [vmem:[%s683] sm:$0xf]
        %685 = vrot.lane.b32.xlu0 %v251, 95
        %v686 = vpop.permute.xlu0 %685
        %687 = vrot.lane.b32.xlu0 %v252, 95
        %v688 = vpop.permute.xlu0 %687
        %689 = vrot.lane.b32.xlu0 %v247, 95
        %v690 = vpop.permute.xlu0 %689
        %vm691 = vcmask 777216
        %v692 = vsel %vm691, %v686, %v688
        %v693 = vsel %vm691, %v688, %v690
        %v695 = vsel %vm266, %v684, 0
        %v698 = vsel %vm270, %v692, 0
        %v701 = vsel %vm270, %v693, 0
        %703 = vmatprep.subr.bf16.mxu0 %v701
        %704 = vmatpush1.bf16.msra.mxu0 %v698
        %705 = vmatprep.subr.bf16.mxu0 0
        %706 = vmatpush1.bf16.msra.mxu0 0
        %707 = vmatprep.subr.bf16.mxu0 0
        %708 = vmatpush1.bf16.msra.mxu0 0
        %709 = vmatprep.subr.bf16.mxu0 0
        %710 = vmatpush1.bf16.msra.mxu0 0
        %711 = vmatprep.subr.bf16.mxu0 0
        %712 = vmatpush1.bf16.msra.mxu0 0
        %713 = vmatprep.subr.bf16.mxu0 0
        %714 = vmatpush1.bf16.msra.mxu0 0
        %715 = vmatprep.subr.bf16.mxu0 0
        %716 = vmatpush1.bf16.msra.mxu0 0
        %717 = vmatprep.subr.bf16.mxu0 0
        %718 = vmatpush1.bf16.msra.mxu0 0
        %719 = vmatprep.subr.bf16.mxu0 0
        %720 = vmatpush1.bf16.msra.mxu0 0
        %721 = vmatprep.subr.bf16.mxu0 0
        %722 = vmatpush1.bf16.msra.mxu0 0
        %723 = vmatprep.subr.bf16.mxu0 0
        %724 = vmatpush1.bf16.msra.mxu0 0
        %725 = vmatprep.subr.bf16.mxu0 0
        %726 = vmatpush1.bf16.msra.mxu0 0
        %727 = vmatprep.subr.bf16.mxu0 0
        %728 = vmatpush1.bf16.msra.mxu0 0
        %729 = vmatprep.subr.bf16.mxu0 0
        %730 = vmatpush1.bf16.msra.mxu0 0
        %731 = vmatprep.subr.bf16.mxu0 0
        %732 = vmatpush1.bf16.msra.mxu0 0
        %733 = vmatprep.subr.bf16.mxu0 0
        %734 = vmatpush1.bf16.msra.mxu0 0
        %735 = vmatprep.mubr.bf16.mxu0 0
        %736 = vmatmul.mubr.bf16.gmra.mrb[0].mxu0 %v695
        %v737 = vpop.f32.mrb[0].mxu0
        %v738 = vadd.f32 0.0, %v737
        %v739 = vpop.f32.mrb[0].mxu0
        %v740 = vadd.f32 0.0, %v739
        %v741 = vpop.f32.mrb[0].mxu0
        %v742 = vpop.f32.mrb[0].mxu0
        %743 = vdwg.mxu0
        %v744 = vadd.f32 %v681, %v738
        %v745 = vadd.f32 %v682, %v740
        %s746 = scalar_lea.vmem %s2, 32
        %v747 = vld [vmem:[%s746] sm:$0xf]
        %748 = vrot.lane.b32.xlu0 %v251, 94
        %v749 = vpop.permute.xlu0 %748
        %750 = vrot.lane.b32.xlu0 %v252, 94
        %v751 = vpop.permute.xlu0 %750
        %752 = vrot.lane.b32.xlu0 %v247, 94
        %v753 = vpop.permute.xlu0 %752
        %vm754 = vcmask 769024
        %v755 = vsel %vm754, %v749, %v751
        %v756 = vsel %vm754, %v751, %v753
        %v758 = vsel %vm266, %v747, 0
        %v761 = vsel %vm270, %v755, 0
        %v764 = vsel %vm270, %v756, 0
        %766 = vmatprep.subr.bf16.mxu0 %v764
        %767 = vmatpush1.bf16.msra.mxu0 %v761
        %768 = vmatprep.subr.bf16.mxu0 0
        %769 = vmatpush1.bf16.msra.mxu0 0
        %770 = vmatprep.subr.bf16.mxu0 0
        %771 = vmatpush1.bf16.msra.mxu0 0
        %772 = vmatprep.subr.bf16.mxu0 0
        %773 = vmatpush1.bf16.msra.mxu0 0
        %774 = vmatprep.subr.bf16.mxu0 0
        %775 = vmatpush1.bf16.msra.mxu0 0
        %776 = vmatprep.subr.bf16.mxu0 0
        %777 = vmatpush1.bf16.msra.mxu0 0
        %778 = vmatprep.subr.bf16.mxu0 0
        %779 = vmatpush1.bf16.msra.mxu0 0
        %780 = vmatprep.subr.bf16.mxu0 0
        %781 = vmatpush1.bf16.msra.mxu0 0
        %782 = vmatprep.subr.bf16.mxu0 0
        %783 = vmatpush1.bf16.msra.mxu0 0
        %784 = vmatprep.subr.bf16.mxu0 0
        %785 = vmatpush1.bf16.msra.mxu0 0
        %786 = vmatprep.subr.bf16.mxu0 0
        %787 = vmatpush1.bf16.msra.mxu0 0
        %788 = vmatprep.subr.bf16.mxu0 0
        %789 = vmatpush1.bf16.msra.mxu0 0
        %790 = vmatprep.subr.bf16.mxu0 0
        %791 = vmatpush1.bf16.msra.mxu0 0
        %792 = vmatprep.subr.bf16.mxu0 0
        %793 = vmatpush1.bf16.msra.mxu0 0
        %794 = vmatprep.subr.bf16.mxu0 0
        %795 = vmatpush1.bf16.msra.mxu0 0
        %796 = vmatprep.subr.bf16.mxu0 0
        %797 = vmatpush1.bf16.msra.mxu0 0
        %798 = vmatprep.mubr.bf16.mxu0 0
        %799 = vmatmul.mubr.bf16.gmra.mrb[0].mxu0 %v758
        %v800 = vpop.f32.mrb[0].mxu0
        %v801 = vadd.f32 0.0, %v800
        %v802 = vpop.f32.mrb[0].mxu0
        %v803 = vadd.f32 0.0, %v802
        %v804 = vpop.f32.mrb[0].mxu0
        %v805 = vpop.f32.mrb[0].mxu0
        %806 = vdwg.mxu0
        %v807 = vadd.f32 %v744, %v801
        %v808 = vadd.f32 %v745, %v803
        %809 = vst [vmem:[%s221] sm:$0xff] %v807
        %810 = vst [vmem:[%s221 + $0x8] sm:$0xff] %v808
        %s811 = sand.u32 %s120, 1
        %s812 = scalar_lea.sflag [#allocation3], %s811
        %s813 = sand.u32 %s120, 1
        %s814 = smul.addr %s813, 16
        %s815 = scalar_lea.vmem [#allocation2], %s814
        // Predicated region
        $region33: #{tpu_custom_call.1} parent=31 // pred_check
          %p816 = pneg %p130
        $region34: #{tpu_custom_call.1} parent=31 // pred_check_branch
          %818 = sbr.rel (%p816) target = $region36
        $region35: #{tpu_custom_call.1} parent=31 // pred_region
          %s819 = smul.u32 2, %s22
          %s821 = ssub.s32 256, 256
          %822 = vsyncadd %s812, %s821
          %s823 = smul.addr %s21, 2
          %s824 = sadd.s32 %s819, %s823
          %s825 = smul.addr %s824, 128
          %s826 = scalar_lea.hbm %s3, %s825
          %s828 = sshll.u32 %s815, 4
          %s829 = int_to_ptr.vmem [resolvable:$true] %s828
          %831 = dma.vmem_to_hbm [thread:$0]  %s829, 256, %s826, %s812
        $region36: #{tpu_custom_call.1} parent=31 // pred_fallthru
          _
      $region32: #{tpu_custom_call.1} parent=5 // pred_fallthru
        _
      %p832 = scmp.le.s32.totalorder 2, %s12
      // Predicated region
      $region37: #{tpu_custom_call.1} parent=5 // pred_check
        %p833 = pneg %p832
      $region38: #{tpu_custom_call.1} parent=5 // pred_check_branch
        %835 = sbr.rel (%p833) target = $region40
      $region39: #{tpu_custom_call.1} parent=5 // pred_region
        %s836 = ssub.s32 %s12, 2
        // Predicated region
        $region41: #{tpu_custom_call.1} parent=39 // pred_check
          %p837 = pneg %p136
        $region42: #{tpu_custom_call.1} parent=39 // pred_check_branch
          %839 = sbr.rel (%p837) target = $region44
        $region43: #{tpu_custom_call.1} parent=39 // pred_region
          %s840 = sand.u32 %s121, 1
          %s841 = scalar_lea.sflag [#allocation3], %s840
          %s842 = sand.u32 %s121, 1
          %s843 = smul.addr %s842, 16
          %s844 = scalar_lea.vmem [#allocation2], %s843
          %845 = dma.done %s841, 256
        $region44: #{tpu_custom_call.1} parent=39 // pred_fallthru
          _
      $region40: #{tpu_custom_call.1} parent=5 // pred_fallthru
        _
    $region6: #{tpu_custom_call.1} parent=1 // loop_footer
      %s16 = sadd.s32 1, %s12
    $region7: #{tpu_custom_call.1} parent=1 // loop_footer_branch
      %11 = sbr.rel target = $region3
    $region8: #{tpu_custom_call.1} parent=1 // loop_exit
      _
    %846 = vsyncpa [#allocation3], 1
    %s847 = scalar_lea.sflag [#allocation3], 1
    %848 = vsyncpa %s847, 1

</llo_original>
